<compile_context>
chip_gen: v7x
topology: tpu7x:2x2x1
jax: 0.10.0
libtpu: 0.0.40
codegen_flags: <defaults>
</compile_context>

<pallas_src>
import functools

import jax
import jax.numpy as jnp
from jax import lax
from jax.experimental import pallas as pl
from jax.experimental.pallas import tpu as pltpu


# ------------------------------ tiling helpers -------------------------------

def _tile(dim, preferred):
    """Largest legal tile: full dim if small/indivisible, else `preferred`.

    `preferred` is always a multiple of (8, 128) so tiled blocks satisfy the
    TPU (8,128) block constraint; the full-dim fallback is always legal.
    """
    if dim <= preferred:
        return dim
    if dim % preferred == 0:
        return preferred
    return dim


def _divisor_tile(dim, preferred):
    """Largest divisor of `dim` that is <= preferred."""
    t = min(dim, preferred)
    while dim % t != 0:
        t -= 1
    return t


# -------------------------- tiled matmul (linear) ---------------------------

def _matmul_kernel(x_ref, w_ref, o_ref, acc_ref):
    @pl.when(pl.program_id(2) == 0)
    def _():
        acc_ref[...] = jnp.zeros_like(acc_ref)

    acc_ref[...] += jnp.dot(
        x_ref[...].astype(jnp.bfloat16),
        w_ref[...].astype(jnp.bfloat16),
        preferred_element_type=jnp.float32,
    )

    @pl.when(pl.program_id(2) == pl.num_programs(2) - 1)
    def _():
        o_ref[...] = acc_ref[...].astype(o_ref.dtype)


def linear(x, w, *, tm_pref=256, tn_pref=256, tk_pref=512, out_dtype=None):
    """x: (M, K) @ w: (K, N) -> (M, N); tiled + K-accumulated Pallas matmul."""
    M, K = x.shape
    K2, N = w.shape
    assert K == K2
    out_dtype = out_dtype if out_dtype is not None else x.dtype
    tm = _tile(M, tm_pref)
    tn = _tile(N, tn_pref)
    tk = _tile(K, tk_pref)
    grid = (M // tm, N // tn, K // tk)
    return pl.pallas_call(
        _matmul_kernel,
        grid=grid,
        out_shape=jax.ShapeDtypeStruct((M, N), out_dtype),
        in_specs=[pl.BlockSpec((tm, tk), lambda i, j, k: (i, k)),
                  pl.BlockSpec((tk, tn), lambda i, j, k: (k, j))],
        out_specs=pl.BlockSpec((tm, tn), lambda i, j, k: (i, j)),
        scratch_shapes=[pltpu.VMEM((tm, tn), jnp.float32)],
        compiler_params=pltpu.CompilerParams(
            dimension_semantics=("parallel", "parallel", "arbitrary")),
    )(x, w)


# ----------------------- flash-style causal attention -----------------------

def _flash_attn_kernel(q_ref, k_ref, v_ref, o_ref, m_sc, l_sc, acc_sc,
                       *, tq, tk):
    qi = pl.program_id(1)
    ki = pl.program_id(2)

    @pl.when(ki == 0)
    def _():
        m_sc[...] = jnp.full(m_sc.shape, -1e30, jnp.float32)
        l_sc[...] = jnp.zeros(l_sc.shape, jnp.float32)
        acc_sc[...] = jnp.zeros(acc_sc.shape, jnp.float32)

    # causal tile skip: compute only if this KV tile intersects the allowed
    # (col <= row) region of this Q tile.
    @pl.when(ki * tk <= qi * tq + (tq - 1))
    def _():
        # q-scale is folded into the projection weights; bf16 MXU operands.
        q = q_ref[0].astype(jnp.bfloat16)                                # (H,tq,D)
        k = k_ref[0].astype(jnp.bfloat16)                                # (H,tk,D)
        v = v_ref[0].astype(jnp.bfloat16)                                # (H,tk,D)

        s = jnp.einsum('hqd,hkd->hqk', q, k,
                       preferred_element_type=jnp.float32)               # (H,tq,tk)
        # 2-D causal mask broadcast over heads (cheaper than a 3-D iota).
        row = qi * tq + lax.broadcasted_iota(jnp.int32, (tq, tk), 0)
        col = ki * tk + lax.broadcasted_iota(jnp.int32, (tq, tk), 1)
        s = jnp.where((col > row)[None, :, :], jnp.float32(-1e30), s)

        m_prev = m_sc[...]                                # (H,tq,1)
        m_new = jnp.maximum(m_prev, s.max(axis=-1, keepdims=True))
        alpha = jnp.exp(m_prev - m_new)
        p = jnp.exp(s - m_new)
        l_sc[...] = alpha * l_sc[...] + p.sum(axis=-1, keepdims=True)
        acc_sc[...] = alpha * acc_sc[...] + jnp.einsum(
            'hqk,hkd->hqd', p.astype(jnp.bfloat16), v,
            preferred_element_type=jnp.float32)
        m_sc[...] = m_new

    @pl.when(ki == pl.num_programs(2) - 1)
    def _():
        inv = pl.reciprocal(l_sc[...], approx=True)
        o_ref[0] = (acc_sc[...] * inv).astype(o_ref.dtype)


def causal_attention(q, k, v, *, tq_pref=128, tk_pref=128):
    """q/k/v: (B, H, N, D) -> (B, H, N, D). Flash-style fused causal attention
    with all heads batched per grid step (head-packed compute)."""
    B, H, N, D = q.shape
    tq = _tile(N, tq_pref)
    tk = _tile(N, tk_pref)
    grid = (B, N // tq, N // tk)
    kern = functools.partial(_flash_attn_kernel, tq=tq, tk=tk)
    q_spec = pl.BlockSpec((1, H, tq, D), lambda b, qi, ki: (b, 0, qi, 0))
    kv_spec = pl.BlockSpec((1, H, tk, D), lambda b, qi, ki: (b, 0, ki, 0))
    return pl.pallas_call(
        kern,
        grid=grid,
        out_shape=jax.ShapeDtypeStruct((B, H, N, D), q.dtype),
        in_specs=[q_spec, kv_spec, kv_spec],
        out_specs=q_spec,
        scratch_shapes=[pltpu.VMEM((H, tq, 1), jnp.float32),
                        pltpu.VMEM((H, tq, 1), jnp.float32),
                        pltpu.VMEM((H, tq, D), jnp.float32)],
        compiler_params=pltpu.CompilerParams(
            dimension_semantics=("parallel", "parallel", "arbitrary")),
    )(q, k, v)


# ------------- fused EmbeddingBag(mode='sum', per_sample_weights) -----------

def _embag_kernel(idx_ref, sc_ref, kemb_ref, vemb_ref, ko_ref, vo_ref,
                  kbuf, vbuf, sem, *, tm, topk):
    step = pl.program_id(0)
    base = step * tm

    # Gather only the needed rows straight from HBM into VMEM (no (M,t,d)
    # materialization in HBM).  Issue every row DMA of this tile first, then
    # wait on all of them, so the copies run concurrently instead of serially.
    copies = []
    for m in range(tm):
        for j in range(topk):
            row = idx_ref[(base + m) * topk + j]
            ck = pltpu.make_async_copy(kemb_ref.at[row], kbuf.at[j, m], sem.at[0])
            cv = pltpu.make_async_copy(vemb_ref.at[row], vbuf.at[j, m], sem.at[1])
            ck.start()
            cv.start()
            copies.append(ck)
            copies.append(cv)
    for c in copies:
        c.wait()

    w = sc_ref[...].astype(jnp.float32)                  # (tm, topk)
    acc_k = jnp.zeros(ko_ref.shape, jnp.float32)
    acc_v = jnp.zeros(vo_ref.shape, jnp.float32)
    for j in range(topk):
        wj = w[:, j:j + 1]                               # (tm, 1)
        acc_k = acc_k + wj * kbuf[j]                     # (tm, d)
        acc_v = acc_v + wj * vbuf[j]
    ko_ref[...] = acc_k.astype(ko_ref.dtype)
    vo_ref[...] = acc_v.astype(vo_ref.dtype)


def embedding_bag_pair(flat_idx, flat_sc, key_emb, val_emb, *, tm_pref=8):
    """Weighted-sum gather for keys and values in one pass.

    flat_idx: (M, topk) int32, flat_sc: (M, topk) f32, *_emb: (E, d).
    Returns (k, v) each (M, d)."""
    M, topk = flat_idx.shape
    E, d = key_emb.shape
    tm = _divisor_tile(M, tm_pref)
    kern = functools.partial(_embag_kernel, tm=tm, topk=topk)
    grid_spec = pltpu.PrefetchScalarGridSpec(
        num_scalar_prefetch=1,
        grid=(M // tm,),
        in_specs=[pl.BlockSpec((tm, topk), lambda i, idx: (i, 0)),
                  pl.BlockSpec(memory_space=pl.ANY),
                  pl.BlockSpec(memory_space=pl.ANY)],
        out_specs=[pl.BlockSpec((tm, d), lambda i, idx: (i, 0)),
                   pl.BlockSpec((tm, d), lambda i, idx: (i, 0))],
        scratch_shapes=[pltpu.VMEM((topk, tm, d), key_emb.dtype),
                        pltpu.VMEM((topk, tm, d), val_emb.dtype),
                        pltpu.SemaphoreType.DMA((2,))],
    )
    return pl.pallas_call(
        kern,
        grid_spec=grid_spec,
        out_shape=(jax.ShapeDtypeStruct((M, d), key_emb.dtype),
                   jax.ShapeDtypeStruct((M, d), val_emb.dtype)),
        compiler_params=pltpu.CompilerParams(dimension_semantics=("arbitrary",)),
    )(flat_idx.reshape(-1).astype(jnp.int32), flat_sc, key_emb, val_emb)


# --------------------------------- PK module --------------------------------

def pk_forward(x, params, *, num_keys, product_keys, topk, final_topk):
    """Product-key lookup; returns softmaxed scores and flat indices."""
    b, n, d = x.shape
    keys = params["pk_keys"]                        # (p, k, h_pk, dim_key)
    p_, k_, h_, dk = keys.shape

    # Algebraic fusion of to_queries + similarity (exact):
    #   sim[b,n,p,h,k] = sum_dd x[b,n,dd] * Wc[dd,p,h,k]
    #   with Wc[dd,p,h,k] = sum_d Wq[dd,(p,h,d)] * keys[p,k,h,d]
    # One lane-dense matmul replaces the tiny-lane bmm + an HBM round trip.
    wq_r = params["pk_wq"].reshape(d, p_, h_, dk)
    wc = jnp.einsum('dphx,pkhx->dphk', wq_r, keys).reshape(d, p_ * h_ * k_)
    sim = linear(x.reshape(b * n, d), wc)           # (b*n, p*h*k) Pallas matmul
    sim = sim.reshape(b, n, p_, h_, k_)

    # TODO(synk): top-k / outer-sum combination kept in plain JAX (data-dependent sort).
    scores, idxs = lax.top_k(sim, topk)             # (b, n, p, h, topk)
    strides = jnp.power(jnp.int32(num_keys),
                        jnp.arange(product_keys, dtype=jnp.int32))
    idxs = idxs * strides[None, None, :, None, None]

    index, score = idxs[:, :, 0], scores[:, :, 0]
    for pi in range(1, product_keys):
        index = (index[..., :, None] + idxs[:, :, pi][..., None, :]
                 ).reshape(*index.shape[:-1], -1)
        score = (score[..., :, None] + scores[:, :, pi][..., None, :]
                 ).reshape(*score.shape[:-1], -1)

    final_scores, pk_sel = lax.top_k(score, final_topk)     # (b, n, h, final_topk)
    final_indices = jnp.take_along_axis(index, pk_sel, axis=-1)
    final_scores = jax.nn.softmax(final_scores, axis=-1)    # softmax_scores=True
    return final_scores, final_indices


# ----------------------------- PKAttention forward ---------------------------

def pk_attention_forward(x, params, cfg):
    b, n, d = x.shape
    heads = cfg["heads"]
    num_kv = cfg["num_key_values"]

    # pre_rmsnorm=False -> Identity norm
    xf = x.reshape(b * n, d)
    scale = float(d) ** -0.5
    # fold the q scale into the projection weight (exact, saves per-tile mults)
    q = linear(xf, params["wq"] * jnp.float32(scale))      # (b*n, heads*d)

    kv_scores, indices = pk_forward(
        x, params,
        num_keys=cfg["num_keys"], product_keys=cfg["product_keys"],
        topk=cfg["pk_topk"], final_topk=cfg["final_topk"])  # (b, n, h, t)

    offsets = jnp.arange(heads, dtype=jnp.int32) * num_kv
    indices = indices.astype(jnp.int32) + offsets[None, None, :, None]

    flat_idx = indices.reshape(-1, indices.shape[-1])       # (b*n*h, t)
    flat_sc = kv_scores.reshape(-1, kv_scores.shape[-1]).astype(jnp.float32)

    # fused EmbeddingBag(mode='sum', per_sample_weights) for keys and values
    k_flat, v_flat = embedding_bag_pair(flat_idx, flat_sc,
                                        params["key_emb"], params["val_emb"])

    # (b, h, n, d) layout for the head-batched flash attention
    q_bh = q.reshape(b, n, heads, d).transpose(0, 2, 1, 3)
    k_bh = k_flat.reshape(b, n, heads, d).transpose(0, 2, 1, 3)
    v_bh = v_flat.reshape(b, n, heads, d).transpose(0, 2, 1, 3)
    out = causal_attention(q_bh, k_bh, v_bh)                # (b, h, n, d)

    # 'b h n d -> b n (h d)' then output projection
    out = out.transpose(0, 2, 1, 3).reshape(b * n, heads * d)
    out = linear(out, params["wo"]).reshape(b, n, d)
    return out


# ----------------------------------- setup ----------------------------------

def init_params(key, *, dim, heads, num_key_values, num_keys, product_keys,
                dim_key, heads_pk=8):
    ks = jax.random.split(key, 6)
    std = 0.02
    return {
        "wq":      jax.random.normal(ks[0], (dim, dim * heads), jnp.float32) * std,
        "wo":      jax.random.normal(ks[1], (dim * heads, dim), jnp.float32) * std,
        "pk_wq":   jax.random.normal(ks[2], (dim, dim_key * product_keys * heads_pk),
                                     jnp.float32) * std,
        "pk_keys": jax.random.normal(ks[3], (product_keys, num_keys, heads_pk, dim_key),
                                     jnp.float32) * std,
        "key_emb": jax.random.normal(ks[4], (num_key_values * heads, dim),
                                     jnp.float32) * std,
        "val_emb": jax.random.normal(ks[5], (num_key_values * heads, dim),
                                     jnp.float32) * std,
    }


if __name__ == "__main__":
    # small config consistent with the module's constraints
    dim = 16
    heads = 8                 # must equal PK's internal heads (8) for the offset broadcast
    num_key_values = 256      # perfect square
    num_keys = 16             # sqrt(num_key_values)
    product_keys = 2
    final_topk = 8            # key_value_pk_topk
    pk_topk = 8               # product_key_topk defaults to final_topk
    dim_key = dim // 2
    b, n = 2, 8

    key = jax.random.PRNGKey(0)
    pkey, xkey = jax.random.split(key)
    params = init_params(pkey, dim=dim, heads=heads, num_key_values=num_key_values,
                         num_keys=num_keys, product_keys=product_keys, dim_key=dim_key)
    x = jax.random.normal(xkey, (b, n, dim), jnp.float32)

    cfg = dict(heads=heads, num_key_values=num_key_values, num_keys=num_keys,
               product_keys=product_keys, pk_topk=pk_topk, final_topk=final_topk)

    out = pk_attention_forward(x, params, cfg)
    jax.block_until_ready(out)
    assert out.shape == (b, n, dim)
    assert bool(jnp.all(jnp.isfinite(out)))
    print("KERNEL_OK")
</pallas_src>

<mosaic_0001>
module attributes {stable_mosaic.version = 11 : i64} {
  func.func @_matmul_kernel(%arg0: i32, %arg1: i32, %arg2: i32, %arg3: memref<16x16xf32, #tpu.memory_space<vmem>>, %arg4: memref<16x128xf32, #tpu.memory_space<vmem>>, %arg5: memref<16x128xf32, #tpu.memory_space<vmem>>, %arg6: memref<16x128xf32, #tpu.memory_space<vmem>>) attributes {dimension_semantics = [#tpu.dimension_semantics<parallel>, #tpu.dimension_semantics<parallel>, #tpu.dimension_semantics<arbitrary>], iteration_bounds = array<i64: 1, 1, 1>, scalar_prefetch = 0 : i64, scratch_operands = 1 : i64, tpu.core_type = #tpu.core_type<tc>, window_params = [{transform_indices = @transform_0, window_bounds = array<i64: 16, 16>}, {transform_indices = @transform_1, window_bounds = array<i64: 16, 128>}, {transform_indices = @transform_2, window_bounds = array<i64: 16, 128>}]} {
    %c0_i32 = arith.constant 0 : i32
    %0 = arith.cmpi eq, %arg2, %c0_i32 : i32
    %1 = arith.extui %0 : i1 to i32
    %c0_i32_0 = arith.constant 0 : i32
    %2 = arith.cmpi ne, %1, %c0_i32_0 : i32
    scf.if %2 {
      %cst_10 = arith.constant 0.000000e+00 : f32
      %14 = vector.broadcast %cst_10 : f32 to vector<16x128xf32>
      %c0_11 = arith.constant 0 : index
      %c0_12 = arith.constant 0 : index
      %15 = vector.load %arg6[%c0_11, %c0_12] : memref<16x128xf32, #tpu.memory_space<vmem>>, vector<16x128xf32>
      tpu.vector_store %arg6[%c0_11, %c0_12], %14 {strides = array<i32>} : memref<16x128xf32, #tpu.memory_space<vmem>>, vector<16x128xf32>,
    } else {
    }
    %c0 = arith.constant 0 : index
    %c0_1 = arith.constant 0 : index
    %3 = vector.load %arg6[%c0, %c0_1] : memref<16x128xf32, #tpu.memory_space<vmem>>, vector<16x128xf32>
    %c0_2 = arith.constant 0 : index
    %c0_3 = arith.constant 0 : index
    %4 = vector.load %arg3[%c0_2, %c0_3] : memref<16x16xf32, #tpu.memory_space<vmem>>, vector<16x16xf32>
    %5 = arith.truncf %4 : vector<16x16xf32> to vector<16x16xbf16>
    %c0_4 = arith.constant 0 : index
    %c0_5 = arith.constant 0 : index
    %6 = vector.load %arg4[%c0_4, %c0_5] : memref<16x128xf32, #tpu.memory_space<vmem>>, vector<16x128xf32>
    %7 = arith.truncf %6 : vector<16x128xf32> to vector<16x128xbf16>
    %cst = arith.constant dense<0.000000e+00> : vector<16x128xf32>
    %8 = tpu.matmul %5, %7, %cst {dimension_numbers = #tpu.dot_dimension_numbers<[1], [0], [0], [1], [0, 0, 1, 1], [], []>} : vector<16x16xbf16>, vector<16x128xbf16>, vector<16x128xf32> -> vector<16x128xf32>
    %9 = arith.addf %3, %8 : vector<16x128xf32>
    %c0_6 = arith.constant 0 : index
    %c0_7 = arith.constant 0 : index
    %10 = vector.load %arg6[%c0_6, %c0_7] : memref<16x128xf32, #tpu.memory_space<vmem>>, vector<16x128xf32>
    tpu.vector_store %arg6[%c0_6, %c0_7], %9 {strides = array<i32>} : memref<16x128xf32, #tpu.memory_space<vmem>>, vector<16x128xf32>,
    %c0_i32_8 = arith.constant 0 : i32
    %11 = arith.cmpi eq, %arg2, %c0_i32_8 : i32
    %12 = arith.extui %11 : i1 to i32
    %c0_i32_9 = arith.constant 0 : i32
    %13 = arith.cmpi ne, %12, %c0_i32_9 : i32
    scf.if %13 {
      %c0_10 = arith.constant 0 : index
      %c0_11 = arith.constant 0 : index
      %14 = vector.load %arg6[%c0_10, %c0_11] : memref<16x128xf32, #tpu.memory_space<vmem>>, vector<16x128xf32>
      %c0_12 = arith.constant 0 : index
      %c0_13 = arith.constant 0 : index
      %15 = vector.load %arg5[%c0_12, %c0_13] : memref<16x128xf32, #tpu.memory_space<vmem>>, vector<16x128xf32>
      tpu.vector_store %arg5[%c0_12, %c0_13], %14 {strides = array<i32>} : memref<16x128xf32, #tpu.memory_space<vmem>>, vector<16x128xf32>,
    } else {
    }
    return
  }
  func.func @transform_0(%arg0: i32, %arg1: i32, %arg2: i32) -> (i32, i32) {
    %c0_i32 = arith.constant 0 : i32
    return %arg0, %arg2 : i32, i32
  }
  func.func @transform_1(%arg0: i32, %arg1: i32, %arg2: i32) -> (i32, i32) {
    %c0_i32 = arith.constant 0 : i32
    return %arg2, %arg1 : i32, i32
  }
  func.func @transform_2(%arg0: i32, %arg1: i32, %arg2: i32) -> (i32, i32) {
    %c0_i32 = arith.constant 0 : i32
    return %arg0, %arg1 : i32, i32
  }
}

</mosaic_0001>

<llo_original>
// kernel: tpu_custom_call.1
$region0: #{tpu_custom_call.1}
  #allocation0 [shape = 'u32[]', space=smem, size = 0x4, offset = 0x4, fixed_abs, tag = 'smem constant byte address 0x4 - core index']
  #allocation1 [shape = 'u32[144,128]{1,0:T(1,128)}', space=vmem, size = 0x12000, scoped, tag = 'internal scratch']
  #allocation2 [shape = 'f32[16,128]{1,0:T(8,128)}', space=vmem, size = 0x2000, scoped, tag = 'scratch operand']
  %s0 = inlined_call_operand.hbm [shape: f32[16,16], index: 0, kind: input, shape index: {}]
  %s1 = inlined_call_operand.hbm [shape: f32[16,128], index: 1, kind: input, shape index: {}]
  %s2 = inlined_call_operand.hbm [shape: f32[16,128], index: 2, kind: output, shape index: {}]
  %s3 = sld [smem:[#allocation0]]
  $region34: #{tpu_custom_call.1} parent=0
    _
  %s5 = ssub.s32 1, %s3
  %s6 = scalar_select 0, %s5, %s3
  $region1: #{tpu_custom_call.1} parent=0
    #allocation3 [shape = 'u8[8192]{0}', space=vmem, size = 0x2000, scoped, tag = 'input window, operand 0, single buffered']
    #allocation4 [shape = 's32[1]{0}', space=sflag, size = 0x4, scoped, tag = 'scoped memory for tpu_custom_call.1']
    #allocation5 [shape = 's32[1]{0}', space=sflag, size = 0x4, scoped, tag = 'scoped memory for tpu_custom_call.1']
    #allocation6 [shape = 'u8[8192]{0}', space=vmem, size = 0x2000, scoped, tag = 'input window, operand 1, single buffered']
    #allocation7 [shape = 's32[1]{0}', space=sflag, size = 0x4, scoped, tag = 'scoped memory for tpu_custom_call.1']
    #allocation8 [shape = 'u8[8192]{0}', space=vmem, size = 0x2000, scoped, tag = 'output window, operand 0, single buffered']
    %7 = vsyncpa [#allocation4], 0
    %8 = vsyncpa [#allocation7], 0
    %9 = vsyncpa [#allocation5], 0
    // Predicated region
    $region2: #{tpu_custom_call.1} parent=1 // pred_check
      _
    $region3: #{tpu_custom_call.1} parent=1 // pred_check_branch
      %11 = sbr.rel (0) target = $region5
    $region4: #{tpu_custom_call.1} parent=1 // pred_region
      %s13 = ssub.s32 256, 256
      %14 = vsyncadd [#allocation4], %s13
      %s15 = sshll.u32 [#allocation3], 4
      %s16 = int_to_ptr.vmem [resolvable:$true] %s15
      %21 = dma.hbm_to_vmem [thread:$0]  %s0, 256, %s16, [#allocation4], 128, 128, 8
    $region5: #{tpu_custom_call.1} parent=1 // pred_fallthru
      _
    // Predicated region
    $region6: #{tpu_custom_call.1} parent=1 // pred_check
      _
    $region7: #{tpu_custom_call.1} parent=1 // pred_check_branch
      %23 = sbr.rel (0) target = $region9
    $region8: #{tpu_custom_call.1} parent=1 // pred_region
      %s25 = ssub.s32 256, 256
      %26 = vsyncadd [#allocation7], %s25
      %s27 = sshll.u32 [#allocation6], 4
      %s28 = int_to_ptr.vmem [resolvable:$true] %s27
      %33 = dma.hbm_to_vmem [thread:$0]  %s1, 256, %s28, [#allocation7], 128, 128, 8
    $region9: #{tpu_custom_call.1} parent=1 // pred_fallthru
      _
    // Predicated region
    $region10: #{tpu_custom_call.1} parent=1 // pred_check
      _
    $region11: #{tpu_custom_call.1} parent=1 // pred_check_branch
      %35 = sbr.rel (0) target = $region13
    $region12: #{tpu_custom_call.1} parent=1 // pred_region
      %36 = dma.done [#allocation4], 256
    $region13: #{tpu_custom_call.1} parent=1 // pred_fallthru
      _
    // Predicated region
    $region14: #{tpu_custom_call.1} parent=1 // pred_check
      _
    $region15: #{tpu_custom_call.1} parent=1 // pred_check_branch
      %38 = sbr.rel (0) target = $region17
    $region16: #{tpu_custom_call.1} parent=1 // pred_region
      %39 = dma.done [#allocation7], 256
    $region17: #{tpu_custom_call.1} parent=1 // pred_fallthru
      _
    %p41 = scmp.eq.s32.totalorder 0, 0
    // Predicated region
    $region18: #{tpu_custom_call.1} parent=1 // pred_check
      %p42 = pneg %p41
    $region19: #{tpu_custom_call.1} parent=1 // pred_check_branch
      %44 = sbr.rel (%p42) target = $region21
    $region20: #{tpu_custom_call.1} parent=1 // pred_region
      %45 = vst [vmem:[#allocation2] sm:$0xff] 0.0
      %46 = vst [vmem:[#allocation2 + $0x8] sm:$0xff] 0.0
    $region21: #{tpu_custom_call.1} parent=1 // pred_fallthru
      _
    %v47 = vld [vmem:[#allocation2] sm:$0xff]
    %v48 = vld [vmem:[#allocation2 + $0x8] sm:$0xff]
    %v49 = vld [vmem:[#allocation3] sm:$0xff]
    %v50 = vld [vmem:[#allocation3 + $0x8] sm:$0xff]
    %v51 = vpack.c.bf16 %v50, %v49
    %v52 = vld [vmem:[#allocation6] sm:$0xff]
    %v53 = vld [vmem:[#allocation6 + $0x8] sm:$0xff]
    %v54 = vpack.c.bf16 %v53, %v52
    %vm55 = vcmask 130048
    %v57 = vsel %vm55, %v51, 0
    %59 = vmatprep.subr.bf16.mxu0 0
    %60 = vmatpush1.bf16.msra.mxu0 %v54
    %61 = vmatprep.subr.bf16.mxu0 0
    %62 = vmatpush1.bf16.msra.mxu0 0
    %63 = vmatprep.subr.bf16.mxu0 0
    %64 = vmatpush1.bf16.msra.mxu0 0
    %65 = vmatprep.subr.bf16.mxu0 0
    %66 = vmatpush1.bf16.msra.mxu0 0
    %67 = vmatprep.subr.bf16.mxu0 0
    %68 = vmatpush1.bf16.msra.mxu0 0
    %69 = vmatprep.subr.bf16.mxu0 0
    %70 = vmatpush1.bf16.msra.mxu0 0
    %71 = vmatprep.subr.bf16.mxu0 0
    %72 = vmatpush1.bf16.msra.mxu0 0
    %73 = vmatprep.subr.bf16.mxu0 0
    %74 = vmatpush1.bf16.msra.mxu0 0
    %75 = vmatprep.subr.bf16.mxu0 0
    %76 = vmatpush1.bf16.msra.mxu0 0
    %77 = vmatprep.subr.bf16.mxu0 0
    %78 = vmatpush1.bf16.msra.mxu0 0
    %79 = vmatprep.subr.bf16.mxu0 0
    %80 = vmatpush1.bf16.msra.mxu0 0
    %81 = vmatprep.subr.bf16.mxu0 0
    %82 = vmatpush1.bf16.msra.mxu0 0
    %83 = vmatprep.subr.bf16.mxu0 0
    %84 = vmatpush1.bf16.msra.mxu0 0
    %85 = vmatprep.subr.bf16.mxu0 0
    %86 = vmatpush1.bf16.msra.mxu0 0
    %87 = vmatprep.subr.bf16.mxu0 0
    %88 = vmatpush1.bf16.msra.mxu0 0
    %89 = vmatprep.subr.bf16.mxu0 0
    %90 = vmatpush1.bf16.msra.mxu0 0
    %91 = vmatprep.mubr.bf16.mxu0 0
    %92 = vmatmul.mubr.bf16.gmra.mrb[0].mxu0 %v57
    %v93 = vpop.f32.mrb[0].mxu0
    %v94 = vadd.f32 0.0, %v93
    %v95 = vpop.f32.mrb[0].mxu0
    %v96 = vpop.f32.mrb[0].mxu0
    %v97 = vadd.f32 0.0, %v96
    %v98 = vpop.f32.mrb[0].mxu0
    %99 = vdwg.mxu0
    %v100 = vadd.f32 %v47, %v94
    %v101 = vadd.f32 %v48, %v97
    %102 = vst [vmem:[#allocation2] sm:$0xff] %v100
    %103 = vst [vmem:[#allocation2 + $0x8] sm:$0xff] %v101
    // Predicated region
    $region22: #{tpu_custom_call.1} parent=1 // pred_check
      %p104 = pneg %p41
    $region23: #{tpu_custom_call.1} parent=1 // pred_check_branch
      %106 = sbr.rel (%p104) target = $region25
    $region24: #{tpu_custom_call.1} parent=1 // pred_region
      %v107 = vld [vmem:[#allocation2] sm:$0xff]
      %v108 = vld [vmem:[#allocation2 + $0x8] sm:$0xff]
      %109 = vst [vmem:[#allocation8] sm:$0xff] %v107
      %110 = vst [vmem:[#allocation8 + $0x8] sm:$0xff] %v108
    $region25: #{tpu_custom_call.1} parent=1 // pred_fallthru
      _
    // Predicated region
    $region26: #{tpu_custom_call.1} parent=1 // pred_check
      _
    $region27: #{tpu_custom_call.1} parent=1 // pred_check_branch
      %112 = sbr.rel (0) target = $region29
    $region28: #{tpu_custom_call.1} parent=1 // pred_region
      %s114 = ssub.s32 256, 256
      %115 = vsyncadd [#allocation5], %s114
      %s116 = sshll.u32 [#allocation8], 4
      %s117 = int_to_ptr.vmem [resolvable:$true] %s116
      %122 = dma.vmem_to_hbm [thread:$0]  %s117, 256, %s2, [#allocation5], 128, 128, 8
    $region29: #{tpu_custom_call.1} parent=1 // pred_fallthru
      _
    // Predicated region
    $region30: #{tpu_custom_call.1} parent=1 // pred_check
      _
    $region31: #{tpu_custom_call.1} parent=1 // pred_check_branch
      %124 = sbr.rel (0) target = $region33
    $region32: #{tpu_custom_call.1} parent=1 // pred_region
      %125 = dma.done [#allocation5], 256
    $region33: #{tpu_custom_call.1} parent=1 // pred_fallthru
      _
    %126 = vsyncpa [#allocation4], 1
    %127 = vsyncpa [#allocation7], 1
    %128 = vsyncpa [#allocation5], 1

</llo_original>
